<compile_context>
chip_gen: v7x
topology: tpu7x:2x2x1
jax: 0.10.0
libtpu: 0.0.40
codegen_flags: <defaults>
</compile_context>

<pallas_src>
import functools

import jax
import jax.numpy as jnp
from jax import lax
from jax.experimental import pallas as pl
from jax.experimental.pallas import tpu as pltpu


MAX_TILE_P = 32768      # lanes per grid step (cap from review; C-aware below)
NUM_SLOTS = 2           # leading "parallel" axis -> 2 TensorCores on v7x

_DEFAULT_VMEM_CAP = 64 << 20


def _vmem_capacity_bytes():
    try:
        info = pltpu.get_tpu_info()
        cap = int(getattr(info, "vmem_capacity_bytes", 0))
        if cap > 0:
            return cap
    except Exception:
        pass
    return _DEFAULT_VMEM_CAP


_VMEM_CAP = _vmem_capacity_bytes()
# generation-aware: v5e/v6e (128 MiB) -> 64 MiB scoped, v7x (64 MiB) -> 32 MiB
_VMEM_LIMIT = int(min(64 << 20, _VMEM_CAP // 2))
# per-step working-set target (inputs x2 buffers + f32 temps), well under limit
_TILE_BUDGET = int(min(16 << 20, _VMEM_CAP // 8))


def _pick_tile_p(c, hw, logits_itemsize, target_itemsize):
    """Largest 128-multiple lane tile whose per-step working set fits budget."""
    # 2x double-buffered input blocks + ~10 materialized (C, TILE_P) f32 temps
    bytes_per_lane = 2 * (c * logits_itemsize + target_itemsize) + 10 * c * 4 + 24
    tile = _TILE_BUDGET // bytes_per_lane
    tile = min(tile, MAX_TILE_P)
    tile = min(tile, ((hw + 127) // 128) * 128)   # no bigger than one image
    return max(128, (tile // 128) * 128)


def _multi_loss_kernel(logits_ref, target_ref,
                       ce_ref, inter_ref, psum_ref, tsum_ref,
                       *, hw, tile_p):
    """One (slot, batch, pixel-tile) step: reduce CE / dice stats over lanes."""
    s = pl.program_id(0)          # core slot
    b = pl.program_id(1)          # batch element
    i = pl.program_id(2)          # pixel tile within this slot
    tiles_per_slot = pl.num_programs(2)

    @pl.when((b == 0) & (i == 0))
    def _init():                  # first step of this slot's resident outputs
        ce_ref[...] = jnp.zeros_like(ce_ref)
        inter_ref[...] = jnp.zeros_like(inter_ref)
        psum_ref[...] = jnp.zeros_like(psum_ref)
        tsum_ref[...] = jnp.zeros_like(tsum_ref)

    x = logits_ref[...].astype(jnp.float32)        # (C, TP) f32 compute
    tgt = target_ref[...].astype(jnp.int32)        # (1, TP) (int8/16/32 ok)
    c = x.shape[0]

    # Validity mask from the *logical* (unclamped) tile index: covers partial
    # last tiles and the clamped overhang tile of the odd slot split.
    lane = lax.broadcasted_iota(jnp.int32, (1, tile_p), 1)
    tile_idx = s * tiles_per_slot + i
    valid = (tile_idx * tile_p + lane) < hw        # (1, TP) bool
    mask_f = valid.astype(jnp.float32)

    # One-hot built in-kernel (no (C, P) HBM stream).
    class_ids = lax.broadcasted_iota(jnp.int32, (c, tile_p), 0)
    onehot = (class_ids == tgt).astype(jnp.float32)          # (C, TP)

    # Numerically stable softmax over the class (sublane) axis; garbage lanes
    # from OOB block reads are zeroed *before* exp/log so no NaN can leak.
    x_max = jnp.max(x, axis=0, keepdims=True)      # (1, TP)
    xs = jnp.where(valid, x - x_max, 0.0)          # (C, TP)
    ex = jnp.exp(xs)
    denom = jnp.sum(ex, axis=0, keepdims=True)     # (1, TP)

    # EUP approx reciprocal + one Newton-Raphson step on the VPU (cheap slots).
    r = pl.reciprocal(denom, approx=True)
    r = r * (2.0 - denom * r)
    prob = ex * r                                  # (C, TP)

    # Cross-entropy via the one-hot identity: -logp[tgt] = log(denom) - xs[tgt]
    tx = jnp.sum(onehot * xs, axis=0, keepdims=True)          # (1, TP)
    ce_ref[...] += jnp.sum((jnp.log(denom) - tx) * mask_f,
                           axis=1, keepdims=True)             # (1, 1)

    # Dice statistics: lane-reduce per step into tiny resident accumulators
    # (mask^2 == mask, so `prob * onehot_m` needs no extra masking).
    onehot_m = onehot * mask_f
    inter_ref[...] += jnp.sum(prob * onehot_m, axis=1, keepdims=True)  # (C,1)
    psum_ref[...] += jnp.sum(prob * mask_f, axis=1, keepdims=True)     # (C,1)
    tsum_ref[...] += jnp.sum(onehot_m, axis=1, keepdims=True)          # (C,1)


def _run_kernel(logits3, target3, hw, tile_p):
    """logits3: (N, C, HW) float, target3: (N, 1, HW) int."""
    n, c, _ = logits3.shape
    num_tiles = pl.cdiv(hw, tile_p)
    tiles_per_slot = pl.cdiv(num_tiles, NUM_SLOTS)
    grid = (NUM_SLOTS, n, tiles_per_slot)

    kernel = functools.partial(_multi_loss_kernel, hw=hw, tile_p=tile_p)

    def in_map(s, b, i):
        # clamp the overhang tile of the last slot; its mask is all-zero anyway
        return (b, 0, jnp.minimum(s * tiles_per_slot + i, num_tiles - 1))

    def out_map(s, b, i):
        return (s, 0, 0)          # per-slot output row (v7x core safety)

    return pl.pallas_call(
        kernel,
        out_shape=(
            jax.ShapeDtypeStruct((NUM_SLOTS, 1, 1), jnp.float32),   # CE sum
            jax.ShapeDtypeStruct((NUM_SLOTS, c, 1), jnp.float32),   # intersection
            jax.ShapeDtypeStruct((NUM_SLOTS, c, 1), jnp.float32),   # prob sum
            jax.ShapeDtypeStruct((NUM_SLOTS, c, 1), jnp.float32),   # target sum
        ),
        grid_spec=pltpu.PrefetchScalarGridSpec(
            num_scalar_prefetch=0,
            grid=grid,
            in_specs=[
                pl.BlockSpec((None, c, tile_p), in_map),
                pl.BlockSpec((None, 1, tile_p), in_map),
            ],
            out_specs=[
                pl.BlockSpec((None, 1, 1), out_map),
                pl.BlockSpec((None, c, 1), out_map),
                pl.BlockSpec((None, c, 1), out_map),
                pl.BlockSpec((None, c, 1), out_map),
            ],
        ),
        compiler_params=pltpu.CompilerParams(
            dimension_semantics=("parallel", "arbitrary", "arbitrary"),
            vmem_limit_bytes=_VMEM_LIMIT,
        ),
    )(logits3, target3)


class MultiLossPallas:
    """JAX/Pallas equivalent of the PyTorch MultiLoss module.

    loss_cfg example (mirrors the torch __init__ semantics):
        [{'loss_name': 'ce',   'loss_weight': 1.0, 'type': 'cross_entropy'},
         {'loss_name': 'dice', 'loss_weight': 0.5, 'type': 'dice'}]
    """

    def __init__(self, loss_cfg):
        self.loss_names = []
        self.loss_weights = []
        self.loss_types = []
        for i, loss_arg in enumerate(loss_cfg):
            loss_arg = dict(loss_arg)
            self.loss_names.append(loss_arg.pop('loss_name', f'loss_{i}'))
            self.loss_weights.append(loss_arg.pop('loss_weight', 1))
            self.loss_types.append(loss_arg.get('type', 'cross_entropy'))

    @functools.partial(jax.jit, static_argnums=0)
    def __call__(self, logits, target):
        # logits: [N, C, H, W] float, target: [N, H, W] int (class indices)
        n, c, h, w = logits.shape
        hw = h * w
        p = n * hw

        if not jnp.issubdtype(target.dtype, jnp.integer):
            target = target.astype(jnp.int32)

        tile_p = _pick_tile_p(c, hw, jnp.dtype(logits.dtype).itemsize,
                              jnp.dtype(target.dtype).itemsize)

        # Free reshapes only — no transpose / pad copy of logits or target.
        logits3 = logits.reshape(n, c, hw)
        target3 = target.reshape(n, 1, hw)

        # --- hot path in the Pallas kernel ---
        ce_p, inter_p, psum_p, tsum_p = _run_kernel(logits3, target3, hw, tile_p)

        # --- tiny scalar finalization (glue): sum the per-slot rows ---
        ce_loss = jnp.sum(ce_p) / jnp.float32(p)          # mean over pixels
        eps = jnp.float32(1e-6)
        inter = jnp.sum(inter_p, axis=(0, 2))             # (C,)
        psum = jnp.sum(psum_p, axis=(0, 2))
        tsum = jnp.sum(tsum_p, axis=(0, 2))
        dice_per_class = 1.0 - (2.0 * inter + eps) / (psum + tsum + eps)
        dice_loss = jnp.mean(dice_per_class)

        raw = {'cross_entropy': ce_loss, 'dice': dice_loss}
        losses = {}
        for name, weight, ltype in zip(self.loss_names, self.loss_weights,
                                       self.loss_types):
            losses[name] = raw[ltype] * jnp.float32(weight)
        losses['loss'] = sum(losses.values())
        return losses


def _reference_losses(logits, target):
    """Pure-JAX reference for cross-entropy (mean) and soft-dice losses."""
    c = logits.shape[1]
    x = logits.astype(jnp.float32)
    logp = jax.nn.log_softmax(x, axis=1)
    ce = -jnp.mean(jnp.take_along_axis(logp, target[:, None, :, :], axis=1))
    prob = jax.nn.softmax(x, axis=1)
    onehot = jnp.moveaxis(jax.nn.one_hot(target, c, dtype=jnp.float32), -1, 1)
    inter = jnp.sum(prob * onehot, axis=(0, 2, 3))
    psum = jnp.sum(prob, axis=(0, 2, 3))
    tsum = jnp.sum(onehot, axis=(0, 2, 3))
    eps = 1e-6
    dice = jnp.mean(1.0 - (2.0 * inter + eps) / (psum + tsum + eps))
    return ce, dice


if __name__ == "__main__":
    key = jax.random.PRNGKey(0)
    k_logits, k_target = jax.random.split(key)

    N, C, H, W = 2, 4, 16, 16
    logits = jax.random.normal(k_logits, (N, C, H, W), dtype=jnp.float32)
    target = jax.random.randint(k_target, (N, H, W), 0, C, dtype=jnp.int32)

    loss_cfg = [
        {'loss_name': 'ce_loss', 'loss_weight': 1.0, 'type': 'cross_entropy'},
        {'loss_name': 'dice_loss', 'loss_weight': 0.5, 'type': 'dice'},
    ]
    multi_loss = MultiLossPallas(loss_cfg)

    losses = multi_loss(logits, target)
    losses = jax.tree_util.tree_map(jax.block_until_ready, losses)

    # sanity vs. pure-JAX reference (Newton step lets us tighten tolerances)
    ref_ce, ref_dice = _reference_losses(logits, target)
    ce_val = float(losses['ce_loss'])
    dice_val = float(losses['dice_loss'])
    assert abs(ce_val - 1.0 * float(ref_ce)) < 2e-4 * max(1.0, abs(float(ref_ce)))
    assert abs(dice_val - 0.5 * float(ref_dice)) < 2e-4

    # total must equal the weighted sum and be finite
    total = float(losses['loss'])
    parts = ce_val + dice_val
    assert abs(total - parts) < 1e-5
    assert all(jnp.isfinite(v) for v in losses.values())

    print("KERNEL_OK")
</pallas_src>

<mosaic_0001>
module attributes {stable_mosaic.version = 11 : i64} {
  func.func @_multi_loss_kernel(%arg0: i32, %arg1: i32, %arg2: i32, %arg3: memref<1x4x256xf32, #tpu.memory_space<vmem>>, %arg4: memref<1x1x256xi32, #tpu.memory_space<vmem>>, %arg5: memref<1x1x1xf32, #tpu.memory_space<vmem>>, %arg6: memref<1x4x1xf32, #tpu.memory_space<vmem>>, %arg7: memref<1x4x1xf32, #tpu.memory_space<vmem>>, %arg8: memref<1x4x1xf32, #tpu.memory_space<vmem>>) attributes {dimension_semantics = [#tpu.dimension_semantics<parallel>, #tpu.dimension_semantics<arbitrary>, #tpu.dimension_semantics<arbitrary>], iteration_bounds = array<i64: 2, 2, 1>, scalar_prefetch = 0 : i64, scratch_operands = 0 : i64, tpu.core_type = #tpu.core_type<tc>, window_params = [{transform_indices = @transform_0, window_bounds = array<i64: 1, 4, 256>}, {transform_indices = @transform_1, window_bounds = array<i64: 1, 1, 256>}, {transform_indices = @transform_2, window_bounds = array<i64: 1, 1, 1>}, {transform_indices = @transform_3, window_bounds = array<i64: 1, 4, 1>}, {transform_indices = @transform_4, window_bounds = array<i64: 1, 4, 1>}, {transform_indices = @transform_5, window_bounds = array<i64: 1, 4, 1>}]} {
    %c0_i32 = arith.constant 0 : i32
    %0 = arith.cmpi eq, %arg1, %c0_i32 : i32
    %c0_i32_0 = arith.constant 0 : i32
    %1 = arith.cmpi eq, %arg2, %c0_i32_0 : i32
    %2 = arith.andi %0, %1 : i1
    %3 = arith.extui %2 : i1 to i32
    %c0_i32_1 = arith.constant 0 : i32
    %4 = arith.cmpi ne, %3, %c0_i32_1 : i32
    scf.if %4 {
      %cst_40 = arith.constant 0.000000e+00 : f32
      %85 = vector.broadcast %cst_40 : f32 to vector<1x1xf32>
      %c0_41 = arith.constant 0 : index
      %c0_42 = arith.constant 0 : index
      %c0_43 = arith.constant 0 : index
      %86 = vector.load %arg5[%c0_41, %c0_42, %c0_43] : memref<1x1x1xf32, #tpu.memory_space<vmem>>, vector<1x1x1xf32>
      %87 = vector.shape_cast %86 : vector<1x1x1xf32> to vector<1x1xf32>
      %88 = vector.shape_cast %85 : vector<1x1xf32> to vector<1x1x1xf32>
      tpu.vector_store %arg5[%c0_41, %c0_42, %c0_43], %88 {strides = array<i32>} : memref<1x1x1xf32, #tpu.memory_space<vmem>>, vector<1x1x1xf32>,
      %cst_44 = arith.constant 0.000000e+00 : f32
      %89 = vector.broadcast %cst_44 : f32 to vector<4x1xf32>
      %c0_45 = arith.constant 0 : index
      %c0_46 = arith.constant 0 : index
      %c0_47 = arith.constant 0 : index
      %90 = vector.load %arg6[%c0_45, %c0_46, %c0_47] : memref<1x4x1xf32, #tpu.memory_space<vmem>>, vector<1x4x1xf32>
      %91 = vector.shape_cast %90 : vector<1x4x1xf32> to vector<4x1xf32>
      %92 = vector.shape_cast %89 : vector<4x1xf32> to vector<1x4x1xf32>
      tpu.vector_store %arg6[%c0_45, %c0_46, %c0_47], %92 {strides = array<i32>} : memref<1x4x1xf32, #tpu.memory_space<vmem>>, vector<1x4x1xf32>,
      %cst_48 = arith.constant 0.000000e+00 : f32
      %93 = vector.broadcast %cst_48 : f32 to vector<4x1xf32>
      %c0_49 = arith.constant 0 : index
      %c0_50 = arith.constant 0 : index
      %c0_51 = arith.constant 0 : index
      %94 = vector.load %arg7[%c0_49, %c0_50, %c0_51] : memref<1x4x1xf32, #tpu.memory_space<vmem>>, vector<1x4x1xf32>
      %95 = vector.shape_cast %94 : vector<1x4x1xf32> to vector<4x1xf32>
      %96 = vector.shape_cast %93 : vector<4x1xf32> to vector<1x4x1xf32>
      tpu.vector_store %arg7[%c0_49, %c0_50, %c0_51], %96 {strides = array<i32>} : memref<1x4x1xf32, #tpu.memory_space<vmem>>, vector<1x4x1xf32>,
      %cst_52 = arith.constant 0.000000e+00 : f32
      %97 = vector.broadcast %cst_52 : f32 to vector<4x1xf32>
      %c0_53 = arith.constant 0 : index
      %c0_54 = arith.constant 0 : index
      %c0_55 = arith.constant 0 : index
      %98 = vector.load %arg8[%c0_53, %c0_54, %c0_55] : memref<1x4x1xf32, #tpu.memory_space<vmem>>, vector<1x4x1xf32>
      %99 = vector.shape_cast %98 : vector<1x4x1xf32> to vector<4x1xf32>
      %100 = vector.shape_cast %97 : vector<4x1xf32> to vector<1x4x1xf32>
      tpu.vector_store %arg8[%c0_53, %c0_54, %c0_55], %100 {strides = array<i32>} : memref<1x4x1xf32, #tpu.memory_space<vmem>>, vector<1x4x1xf32>,
    } else {
    }
    %c0 = arith.constant 0 : index
    %c0_2 = arith.constant 0 : index
    %c0_3 = arith.constant 0 : index
    %5 = vector.load %arg3[%c0, %c0_2, %c0_3] : memref<1x4x256xf32, #tpu.memory_space<vmem>>, vector<1x4x256xf32>
    %6 = vector.shape_cast %5 : vector<1x4x256xf32> to vector<4x256xf32>
    %c0_4 = arith.constant 0 : index
    %c0_5 = arith.constant 0 : index
    %c0_6 = arith.constant 0 : index
    %7 = vector.load %arg4[%c0_4, %c0_5, %c0_6] : memref<1x1x256xi32, #tpu.memory_space<vmem>>, vector<1x1x256xi32>
    %8 = vector.shape_cast %7 : vector<1x1x256xi32> to vector<1x256xi32>
    %9 = tpu.iota {dimensions = array<i32: 1>} : vector<1x256xi32>
    %c1_i32 = arith.constant 1 : i32
    %10 = arith.muli %arg0, %c1_i32 : i32
    %11 = arith.addi %10, %arg2 : i32
    %c256_i32 = arith.constant 256 : i32
    %12 = arith.muli %11, %c256_i32 : i32
    %13 = vector.broadcast %12 : i32 to vector<1x256xi32>
    %14 = arith.addi %13, %9 : vector<1x256xi32>
    %c256_i32_7 = arith.constant 256 : i32
    %15 = vector.broadcast %c256_i32_7 : i32 to vector<1x256xi32>
    %16 = arith.cmpi slt, %14, %15 : vector<1x256xi32>
    %17 = arith.extui %16 : vector<1x256xi1> to vector<1x256xi32>
    %18 = arith.sitofp %17 : vector<1x256xi32> to vector<1x256xf32>
    %19 = tpu.iota {dimensions = array<i32: 0>} : vector<4x256xi32>
    %20 = vector.broadcast %8 : vector<1x256xi32> to vector<4x256xi32>
    %21 = arith.cmpi eq, %19, %20 : vector<4x256xi32>
    %22 = arith.extui %21 : vector<4x256xi1> to vector<4x256xi32>
    %23 = arith.sitofp %22 : vector<4x256xi32> to vector<4x256xf32>
    %cst = arith.constant dense<0xFF800000> : vector<256xf32>
    %24 = vector.multi_reduction <maximumf>, %6, %cst [0] : vector<4x256xf32> to vector<256xf32>
    %25 = vector.shape_cast %24 : vector<256xf32> to vector<1x256xf32>
    %26 = vector.broadcast %25 : vector<1x256xf32> to vector<4x256xf32>
    %27 = arith.subf %6, %26 : vector<4x256xf32>
    %cst_8 = arith.constant 0.000000e+00 : f32
    %28 = vector.shape_cast %16 : vector<1x256xi1> to vector<1x256xi1>
    %29 = vector.broadcast %28 : vector<1x256xi1> to vector<4x256xi1>
    %30 = vector.broadcast %cst_8 : f32 to vector<4x256xf32>
    %31 = arith.select %29, %27, %30 : vector<4x256xi1>, vector<4x256xf32>
    %32 = math.exp %31 : vector<4x256xf32>
    %cst_9 = arith.constant dense<0.000000e+00> : vector<256xf32>
    %33 = vector.multi_reduction <add>, %32, %cst_9 [0] : vector<4x256xf32> to vector<256xf32>
    %34 = vector.shape_cast %33 : vector<256xf32> to vector<1x256xf32>
    %35 = tpu.reciprocal %34 {approx = true} : vector<1x256xf32> -> vector<1x256xf32>
    %36 = arith.mulf %34, %35 : vector<1x256xf32>
    %cst_10 = arith.constant 2.000000e+00 : f32
    %37 = vector.broadcast %cst_10 : f32 to vector<1x256xf32>
    %38 = arith.subf %37, %36 : vector<1x256xf32>
    %39 = arith.mulf %35, %38 : vector<1x256xf32>
    %40 = vector.broadcast %39 : vector<1x256xf32> to vector<4x256xf32>
    %41 = arith.mulf %32, %40 : vector<4x256xf32>
    %42 = arith.mulf %23, %31 : vector<4x256xf32>
    %cst_11 = arith.constant dense<0.000000e+00> : vector<256xf32>
    %43 = vector.multi_reduction <add>, %42, %cst_11 [0] : vector<4x256xf32> to vector<256xf32>
    %44 = vector.shape_cast %43 : vector<256xf32> to vector<1x256xf32>
    %c0_12 = arith.constant 0 : index
    %c0_13 = arith.constant 0 : index
    %c0_14 = arith.constant 0 : index
    %45 = vector.load %arg5[%c0_12, %c0_13, %c0_14] : memref<1x1x1xf32, #tpu.memory_space<vmem>>, vector<1x1x1xf32>
    %46 = vector.shape_cast %45 : vector<1x1x1xf32> to vector<1x1xf32>
    %47 = math.log %34 : vector<1x256xf32>
    %48 = arith.subf %47, %44 : vector<1x256xf32>
    %49 = arith.mulf %48, %18 : vector<1x256xf32>
    %cst_15 = arith.constant dense<0.000000e+00> : vector<1xf32>
    %50 = vector.multi_reduction <add>, %49, %cst_15 [1] : vector<1x256xf32> to vector<1xf32>
    %51 = vector.shape_cast %50 : vector<1xf32> to vector<1x1xf32>
    %52 = arith.addf %46, %51 : vector<1x1xf32>
    %c0_16 = arith.constant 0 : index
    %c0_17 = arith.constant 0 : index
    %c0_18 = arith.constant 0 : index
    %53 = vector.load %arg5[%c0_16, %c0_17, %c0_18] : memref<1x1x1xf32, #tpu.memory_space<vmem>>, vector<1x1x1xf32>
    %54 = vector.shape_cast %53 : vector<1x1x1xf32> to vector<1x1xf32>
    %55 = vector.shape_cast %52 : vector<1x1xf32> to vector<1x1x1xf32>
    tpu.vector_store %arg5[%c0_16, %c0_17, %c0_18], %55 {strides = array<i32>} : memref<1x1x1xf32, #tpu.memory_space<vmem>>, vector<1x1x1xf32>,
    %56 = vector.broadcast %18 : vector<1x256xf32> to vector<4x256xf32>
    %57 = arith.mulf %23, %56 : vector<4x256xf32>
    %c0_19 = arith.constant 0 : index
    %c0_20 = arith.constant 0 : index
    %c0_21 = arith.constant 0 : index
    %58 = vector.load %arg6[%c0_19, %c0_20, %c0_21] : memref<1x4x1xf32, #tpu.memory_space<vmem>>, vector<1x4x1xf32>
    %59 = vector.shape_cast %58 : vector<1x4x1xf32> to vector<4x1xf32>
    %60 = arith.mulf %41, %57 : vector<4x256xf32>
    %cst_22 = arith.constant dense<0.000000e+00> : vector<4xf32>
    %61 = vector.multi_reduction <add>, %60, %cst_22 [1] : vector<4x256xf32> to vector<4xf32>
    %62 = vector.shape_cast %61 : vector<4xf32> to vector<4x1xf32>
    %63 = arith.addf %59, %62 : vector<4x1xf32>
    %c0_23 = arith.constant 0 : index
    %c0_24 = arith.constant 0 : index
    %c0_25 = arith.constant 0 : index
    %64 = vector.load %arg6[%c0_23, %c0_24, %c0_25] : memref<1x4x1xf32, #tpu.memory_space<vmem>>, vector<1x4x1xf32>
    %65 = vector.shape_cast %64 : vector<1x4x1xf32> to vector<4x1xf32>
    %66 = vector.shape_cast %63 : vector<4x1xf32> to vector<1x4x1xf32>
    tpu.vector_store %arg6[%c0_23, %c0_24, %c0_25], %66 {strides = array<i32>} : memref<1x4x1xf32, #tpu.memory_space<vmem>>, vector<1x4x1xf32>,
    %c0_26 = arith.constant 0 : index
    %c0_27 = arith.constant 0 : index
    %c0_28 = arith.constant 0 : index
    %67 = vector.load %arg7[%c0_26, %c0_27, %c0_28] : memref<1x4x1xf32, #tpu.memory_space<vmem>>, vector<1x4x1xf32>
    %68 = vector.shape_cast %67 : vector<1x4x1xf32> to vector<4x1xf32>
    %69 = vector.broadcast %18 : vector<1x256xf32> to vector<4x256xf32>
    %70 = arith.mulf %41, %69 : vector<4x256xf32>
    %cst_29 = arith.constant dense<0.000000e+00> : vector<4xf32>
    %71 = vector.multi_reduction <add>, %70, %cst_29 [1] : vector<4x256xf32> to vector<4xf32>
    %72 = vector.shape_cast %71 : vector<4xf32> to vector<4x1xf32>
    %73 = arith.addf %68, %72 : vector<4x1xf32>
    %c0_30 = arith.constant 0 : index
    %c0_31 = arith.constant 0 : index
    %c0_32 = arith.constant 0 : index
    %74 = vector.load %arg7[%c0_30, %c0_31, %c0_32] : memref<1x4x1xf32, #tpu.memory_space<vmem>>, vector<1x4x1xf32>
    %75 = vector.shape_cast %74 : vector<1x4x1xf32> to vector<4x1xf32>
    %76 = vector.shape_cast %73 : vector<4x1xf32> to vector<1x4x1xf32>
    tpu.vector_store %arg7[%c0_30, %c0_31, %c0_32], %76 {strides = array<i32>} : memref<1x4x1xf32, #tpu.memory_space<vmem>>, vector<1x4x1xf32>,
    %c0_33 = arith.constant 0 : index
    %c0_34 = arith.constant 0 : index
    %c0_35 = arith.constant 0 : index
    %77 = vector.load %arg8[%c0_33, %c0_34, %c0_35] : memref<1x4x1xf32, #tpu.memory_space<vmem>>, vector<1x4x1xf32>
    %78 = vector.shape_cast %77 : vector<1x4x1xf32> to vector<4x1xf32>
    %cst_36 = arith.constant dense<0.000000e+00> : vector<4xf32>
    %79 = vector.multi_reduction <add>, %57, %cst_36 [1] : vector<4x256xf32> to vector<4xf32>
    %80 = vector.shape_cast %79 : vector<4xf32> to vector<4x1xf32>
    %81 = arith.addf %78, %80 : vector<4x1xf32>
    %c0_37 = arith.constant 0 : index
    %c0_38 = arith.constant 0 : index
    %c0_39 = arith.constant 0 : index
    %82 = vector.load %arg8[%c0_37, %c0_38, %c0_39] : memref<1x4x1xf32, #tpu.memory_space<vmem>>, vector<1x4x1xf32>
    %83 = vector.shape_cast %82 : vector<1x4x1xf32> to vector<4x1xf32>
    %84 = vector.shape_cast %81 : vector<4x1xf32> to vector<1x4x1xf32>
    tpu.vector_store %arg8[%c0_37, %c0_38, %c0_39], %84 {strides = array<i32>} : memref<1x4x1xf32, #tpu.memory_space<vmem>>, vector<1x4x1xf32>,
    return
  }
  func.func @transform_0(%arg0: i32, %arg1: i32, %arg2: i32) -> (i32, i32, i32) {
    %c1_i32 = arith.constant 1 : i32
    %0 = arith.muli %arg0, %c1_i32 : i32
    %1 = arith.addi %0, %arg2 : i32
    %c0_i32 = arith.constant 0 : i32
    %2 = arith.minsi %1, %c0_i32 : i32
    %c0_i32_0 = arith.constant 0 : i32
    %c0_i32_1 = arith.constant 0 : i32
    return %arg1, %c0_i32_0, %2 : i32, i32, i32
  }
  func.func @transform_1(%arg0: i32, %arg1: i32, %arg2: i32) -> (i32, i32, i32) {
    %c1_i32 = arith.constant 1 : i32
    %0 = arith.muli %arg0, %c1_i32 : i32
    %1 = arith.addi %0, %arg2 : i32
    %c0_i32 = arith.constant 0 : i32
    %2 = arith.minsi %1, %c0_i32 : i32
    %c0_i32_0 = arith.constant 0 : i32
    %c0_i32_1 = arith.constant 0 : i32
    return %arg1, %c0_i32_0, %2 : i32, i32, i32
  }
  func.func @transform_2(%arg0: i32, %arg1: i32, %arg2: i32) -> (i32, i32, i32) {
    %c0_i32 = arith.constant 0 : i32
    %c0_i32_0 = arith.constant 0 : i32
    %c0_i32_1 = arith.constant 0 : i32
    return %arg0, %c0_i32, %c0_i32_0 : i32, i32, i32
  }
  func.func @transform_3(%arg0: i32, %arg1: i32, %arg2: i32) -> (i32, i32, i32) {
    %c0_i32 = arith.constant 0 : i32
    %c0_i32_0 = arith.constant 0 : i32
    %c0_i32_1 = arith.constant 0 : i32
    return %arg0, %c0_i32, %c0_i32_0 : i32, i32, i32
  }
  func.func @transform_4(%arg0: i32, %arg1: i32, %arg2: i32) -> (i32, i32, i32) {
    %c0_i32 = arith.constant 0 : i32
    %c0_i32_0 = arith.constant 0 : i32
    %c0_i32_1 = arith.constant 0 : i32
    return %arg0, %c0_i32, %c0_i32_0 : i32, i32, i32
  }
  func.func @transform_5(%arg0: i32, %arg1: i32, %arg2: i32) -> (i32, i32, i32) {
    %c0_i32 = arith.constant 0 : i32
    %c0_i32_0 = arith.constant 0 : i32
    %c0_i32_1 = arith.constant 0 : i32
    return %arg0, %c0_i32, %c0_i32_0 : i32, i32, i32
  }
}

</mosaic_0001>

<llo_original>
// kernel: a_call__.1
$region0: #{a_call__.1}
  #allocation0 [shape = 'u32[]', space=smem, size = 0x4, offset = 0x4, fixed_abs, tag = 'smem constant byte address 0x4 - core index']
  #allocation1 [shape = 'u32[144,128]{1,0:T(1,128)}', space=vmem, size = 0x12000, scoped, tag = 'internal scratch']
  %s0 = inlined_call_operand.vmem [shape: f32[2,4,256], index: 0, kind: input, shape index: {}]
  %s1 = inlined_call_operand.vmem [shape: s32[2,1,256], index: 1, kind: input, shape index: {}]
  %s2 = inlined_call_operand.vmem [shape: f32[2,1,1], index: 2, kind: output, shape index: {0}]
  %s3 = inlined_call_operand.vmem [shape: f32[2,4,1], index: 3, kind: output, shape index: {1}]
  %s4 = inlined_call_operand.vmem [shape: f32[2,4,1], index: 4, kind: output, shape index: {2}]
  %s5 = inlined_call_operand.vmem [shape: f32[2,4,1], index: 5, kind: output, shape index: {3}]
  %6 = xla_tuple %s2, %s3, %s4, %s5
  %s7 = sld [smem:[#allocation0]]
  $region69: #{a_call__.1} parent=0
    _
  %s9 = ssub.s32 1, %s7
  %s10 = scalar_select 0, %s9, %s7
  loop: start=0, step=1, limit=6
  $region2: #{a_call__.1} parent=0 // loop_pre_header
    _
  $region3: #{a_call__.1} parent=0 // loop_header
    %s12 = sphi 0, %s16
    %p13 = scmp.ge.s32.totalorder %s12, 6
    %s19 = sphi 0, %s38
    %s20 = sphi 0, %s34
    %s21 = sphi 0, %s30
    %s22 = sphi 0, %s19
    %s23 = sphi 0, %s20
    %s24 = sphi 0, %s21
    %s25 = sphi 0, %s22
    %s26 = sphi 0, %s23
    %s27 = sphi 0, %s24
    %s49 = sphi 0, %s51
    %s52 = sphi 0, %s49
    %s53 = sphi 0, %s52
    %s69 = sphi 0, %s53
    %s83 = sphi 0, %s85
    %s86 = sphi 0, %s83
    %s87 = sphi 0, %s86
    %s103 = sphi 0, %s87
    %s109 = sphi 0, %s111
    %s112 = sphi 0, %s109
    %s113 = sphi 0, %s112
    %s129 = sphi 0, %s113
    %s135 = sphi 0, %s137
    %s138 = sphi 0, %s135
    %s139 = sphi 0, %s138
    %s155 = sphi 0, %s139
    %s161 = sphi 0, %s163
    %s164 = sphi 0, %s161
    %s165 = sphi 0, %s164
    %s181 = sphi 0, %s165
    %s187 = sphi 0, %s189
    %s190 = sphi 0, %s187
    %s191 = sphi 0, %s190
    %s207 = sphi 0, %s191
  $region4: #{a_call__.1} parent=0 // loop_header_branch
    %15 = sbr.rel (%p13) target = $region8
  $region5: #{a_call__.1} parent=0 // loop_body
    %s17 = ssub.s32 %s12, 1
    %s18 = ssub.s32 %s12, 2
    %s28 = sadd.s32 1, %s21
    %p29 = scmp.ge.s32.totalorder %s28, 1
    %s30 = scalar_select %p29, 0, %s28
    %s31 = sadd.s32 1, %s20
    %s32 = scalar_select %p29, %s31, %s20
    %p33 = scmp.ge.s32.totalorder %s32, 2
    %s34 = scalar_select %p33, 0, %s32
    %s35 = sadd.s32 1, %s19
    %s36 = scalar_select %p33, %s35, %s19
    %p37 = scmp.ge.s32.totalorder %s36, 2
    %s38 = scalar_select %p37, 0, %s36
    %s39 = sadd.s32 %s19, %s21
    %p40 = scmp.lt.s32.totalorder %s39, 0
    %s41 = scalar_select %p40, %s39, 0
    %s42 = sadd.s32 %s38, %s30
    %p43 = scmp.lt.s32.totalorder %s42, 0
    %s44 = scalar_select %p43, %s42, 0
    %s45 = ssub.s32 %s20, %s34
    %s46 = ssub.s32 %s41, %s44
    %s47 = sor.u32 %s45, %s46
    %p48 = scmp.eq.s32.totalorder %s47, 0
    %s50 = sadd.s32 %s49, 1
    %s51 = scalar_select %p48, %s49, %s50
    %p54 = pneg %p48
    %p55 = scmp.eq.s32.totalorder %s12, 3
    %p56 = por %p54, %p55
    %p57 = scmp.ne.s32.totalorder %s49, %s52
    %p58 = scmp.eq.s32.totalorder %s12, 0
    %p59 = por %p57, %p58
    %p60 = scmp.ne.s32.totalorder %s49, %s52
    %p61 = scmp.eq.s32.totalorder %s17, 3
    %p62 = por %p60, %p61
    %p63 = scmp.ne.s32.totalorder %s52, %s53
    %p64 = scmp.eq.s32.totalorder %s17, 0
    %p65 = por %p63, %p64
    %p66 = scmp.ne.s32.totalorder %s52, %s53
    %p67 = scmp.eq.s32.totalorder %s18, 3
    %p68 = por %p66, %p67
    %p70 = scmp.ne.s32.totalorder %s53, %s69
    %p71 = scmp.eq.s32.totalorder %s18, 0
    %p72 = por %p70, %p71
    %s73 = sadd.s32 %s19, %s21
    %p74 = scmp.lt.s32.totalorder %s73, 0
    %s75 = scalar_select %p74, %s73, 0
    %s76 = sadd.s32 %s38, %s30
    %p77 = scmp.lt.s32.totalorder %s76, 0
    %s78 = scalar_select %p77, %s76, 0
    %s79 = ssub.s32 %s20, %s34
    %s80 = ssub.s32 %s75, %s78
    %s81 = sor.u32 %s79, %s80
    %p82 = scmp.eq.s32.totalorder %s81, 0
    %s84 = sadd.s32 %s83, 1
    %s85 = scalar_select %p82, %s83, %s84
    %p88 = pneg %p82
    %p89 = scmp.eq.s32.totalorder %s12, 3
    %p90 = por %p88, %p89
    %p91 = scmp.ne.s32.totalorder %s83, %s86
    %p92 = scmp.eq.s32.totalorder %s12, 0
    %p93 = por %p91, %p92
    %p94 = scmp.ne.s32.totalorder %s83, %s86
    %p95 = scmp.eq.s32.totalorder %s17, 3
    %p96 = por %p94, %p95
    %p97 = scmp.ne.s32.totalorder %s86, %s87
    %p98 = scmp.eq.s32.totalorder %s17, 0
    %p99 = por %p97, %p98
    %p100 = scmp.ne.s32.totalorder %s86, %s87
    %p101 = scmp.eq.s32.totalorder %s18, 3
    %p102 = por %p100, %p101
    %p104 = scmp.ne.s32.totalorder %s87, %s103
    %p105 = scmp.eq.s32.totalorder %s18, 0
    %p106 = por %p104, %p105
    %s107 = ssub.s32 %s19, %s38
    %p108 = scmp.eq.s32.totalorder %s107, 0
    %s110 = sadd.s32 %s109, 1
    %s111 = scalar_select %p108, %s109, %s110
    %p114 = pneg %p108
    %p115 = scmp.eq.s32.totalorder %s12, 3
    %p116 = por %p114, %p115
    %p117 = scmp.ne.s32.totalorder %s109, %s112
    %p118 = scmp.eq.s32.totalorder %s12, 0
    %p119 = por %p117, %p118
    %p120 = scmp.ne.s32.totalorder %s109, %s112
    %p121 = scmp.eq.s32.totalorder %s17, 3
    %p122 = por %p120, %p121
    %p123 = scmp.ne.s32.totalorder %s112, %s113
    %p124 = scmp.eq.s32.totalorder %s17, 0
    %p125 = por %p123, %p124
    %p126 = scmp.ne.s32.totalorder %s112, %s113
    %p127 = scmp.eq.s32.totalorder %s18, 3
    %p128 = por %p126, %p127
    %p130 = scmp.ne.s32.totalorder %s113, %s129
    %p131 = scmp.eq.s32.totalorder %s18, 0
    %p132 = por %p130, %p131
    %s133 = ssub.s32 %s19, %s38
    %p134 = scmp.eq.s32.totalorder %s133, 0
    %s136 = sadd.s32 %s135, 1
    %s137 = scalar_select %p134, %s135, %s136
    %p140 = pneg %p134
    %p141 = scmp.eq.s32.totalorder %s12, 3
    %p142 = por %p140, %p141
    %p143 = scmp.ne.s32.totalorder %s135, %s138
    %p144 = scmp.eq.s32.totalorder %s12, 0
    %p145 = por %p143, %p144
    %p146 = scmp.ne.s32.totalorder %s135, %s138
    %p147 = scmp.eq.s32.totalorder %s17, 3
    %p148 = por %p146, %p147
    %p149 = scmp.ne.s32.totalorder %s138, %s139
    %p150 = scmp.eq.s32.totalorder %s17, 0
    %p151 = por %p149, %p150
    %p152 = scmp.ne.s32.totalorder %s138, %s139
    %p153 = scmp.eq.s32.totalorder %s18, 3
    %p154 = por %p152, %p153
    %p156 = scmp.ne.s32.totalorder %s139, %s155
    %p157 = scmp.eq.s32.totalorder %s18, 0
    %p158 = por %p156, %p157
    %s159 = ssub.s32 %s19, %s38
    %p160 = scmp.eq.s32.totalorder %s159, 0
    %s162 = sadd.s32 %s161, 1
    %s163 = scalar_select %p160, %s161, %s162
    %p166 = pneg %p160
    %p167 = scmp.eq.s32.totalorder %s12, 3
    %p168 = por %p166, %p167
    %p169 = scmp.ne.s32.totalorder %s161, %s164
    %p170 = scmp.eq.s32.totalorder %s12, 0
    %p171 = por %p169, %p170
    %p172 = scmp.ne.s32.totalorder %s161, %s164
    %p173 = scmp.eq.s32.totalorder %s17, 3
    %p174 = por %p172, %p173
    %p175 = scmp.ne.s32.totalorder %s164, %s165
    %p176 = scmp.eq.s32.totalorder %s17, 0
    %p177 = por %p175, %p176
    %p178 = scmp.ne.s32.totalorder %s164, %s165
    %p179 = scmp.eq.s32.totalorder %s18, 3
    %p180 = por %p178, %p179
    %p182 = scmp.ne.s32.totalorder %s165, %s181
    %p183 = scmp.eq.s32.totalorder %s18, 0
    %p184 = por %p182, %p183
    %s185 = ssub.s32 %s19, %s38
    %p186 = scmp.eq.s32.totalorder %s185, 0
    %s188 = sadd.s32 %s187, 1
    %s189 = scalar_select %p186, %s187, %s188
    %p192 = pneg %p186
    %p193 = scmp.eq.s32.totalorder %s12, 3
    %p194 = por %p192, %p193
    %p195 = scmp.ne.s32.totalorder %s187, %s190
    %p196 = scmp.eq.s32.totalorder %s12, 0
    %p197 = por %p195, %p196
    %p198 = scmp.ne.s32.totalorder %s187, %s190
    %p199 = scmp.eq.s32.totalorder %s17, 3
    %p200 = por %p198, %p199
    %p201 = scmp.ne.s32.totalorder %s190, %s191
    %p202 = scmp.eq.s32.totalorder %s17, 0
    %p203 = por %p201, %p202
    %p204 = scmp.ne.s32.totalorder %s190, %s191
    %p205 = scmp.eq.s32.totalorder %s18, 3
    %p206 = por %p204, %p205
    %p208 = scmp.ne.s32.totalorder %s191, %s207
    %p209 = scmp.eq.s32.totalorder %s18, 0
    %p210 = por %p208, %p209
    %p211 = scmp.le.s32.totalorder 1, %s12
    %p212 = scmp.lt.s32.totalorder %s12, 5
    %p213 = pnand %p211, %p212
    %p214 = pneg %p213
    // Predicated region
    $region9: #{a_call__.1} parent=5 // pred_check
      _
    $region10: #{a_call__.1} parent=5 // pred_check_branch
      %216 = sbr.rel (%p213) target = $region12
    $region11: #{a_call__.1} parent=5 // pred_region
      %s217 = ssub.s32 %s12, 1
    $region12: #{a_call__.1} parent=5 // pred_fallthru
      _
    %p218 = scmp.lt.s32.totalorder %s12, 4
    // Predicated region
    $region13: #{a_call__.1} parent=5 // pred_check
      %p219 = pneg %p218
    $region14: #{a_call__.1} parent=5 // pred_check_branch
      %221 = sbr.rel (%p219) target = $region16
    $region15: #{a_call__.1} parent=5 // pred_region
      // Predicated region
      $region17: #{a_call__.1} parent=15 // pred_check
        %p222 = pneg %p59
      $region18: #{a_call__.1} parent=15 // pred_check_branch
        %224 = sbr.rel (%p222) target = $region20
      $region19: #{a_call__.1} parent=15 // pred_region
        %s225 = sadd.s32 %s19, %s21
        %p226 = scmp.lt.s32.totalorder %s225, 0
        %s227 = scalar_select %p226, %s225, 0
        %s228 = smul.u32 2, %s227
        %p229 = scmp.lt.s32.totalorder %s20, 1
        %s230 = scalar_select %p229, %s20, 1
        %p231 = scmp.lt.s32.totalorder %s228, 1
        %s232 = scalar_select %p231, %s228, 1
        %s233 = smul.addr %s230, 2
        %s234 = sadd.s32 %s232, %s233
        %s235 = smul.addr %s234, 4
        %s236 = scalar_lea.vmem %s0, %s235
        %s237 = sadd.s32 %s19, %s21
        %p238 = scmp.lt.s32.totalorder %s237, 0
        %s239 = scalar_select %p238, %s237, 0
        %s240 = smul.u32 2, %s239
      $region20: #{a_call__.1} parent=15 // pred_fallthru
        _
      // Predicated region
      $region21: #{a_call__.1} parent=15 // pred_check
        %p241 = pneg %p93
      $region22: #{a_call__.1} parent=15 // pred_check_branch
        %243 = sbr.rel (%p241) target = $region24
      $region23: #{a_call__.1} parent=15 // pred_region
        %s244 = sadd.s32 %s19, %s21
        %p245 = scmp.lt.s32.totalorder %s244, 0
        %s246 = scalar_select %p245, %s244, 0
        %s247 = smul.u32 2, %s246
        %p248 = scmp.lt.s32.totalorder %s20, 1
        %s249 = scalar_select %p248, %s20, 1
        %p250 = scmp.lt.s32.totalorder %s247, 1
        %s251 = scalar_select %p250, %s247, 1
        %s252 = smul.addr %s249, 2
        %s253 = sadd.s32 %s251, %s252
        %s254 = scalar_lea.vmem %s1, %s253
        %s255 = sadd.s32 %s19, %s21
        %p256 = scmp.lt.s32.totalorder %s255, 0
        %s257 = scalar_select %p256, %s255, 0
        %s258 = smul.u32 2, %s257
      $region24: #{a_call__.1} parent=15 // pred_fallthru
        _
    $region16: #{a_call__.1} parent=5 // pred_fallthru
      _
    %p259 = scmp.le.s32.totalorder 1, %s12
    %p260 = scmp.lt.s32.totalorder %s12, 5
    %p261 = pnand %p259, %p260
    %p262 = pneg %p261
    // Predicated region
    $region25: #{a_call__.1} parent=5 // pred_check
      _
    $region26: #{a_call__.1} parent=5 // pred_check_branch
      %264 = sbr.rel (%p261) target = $region28
    $region27: #{a_call__.1} parent=5 // pred_region
      %s265 = ssub.s32 %s12, 1
      %s266 = sadd.s32 %s22, %s24
      %p267 = scmp.lt.s32.totalorder %s266, 0
      %s268 = scalar_select %p267, %s266, 0
      %s269 = smul.u32 2, %s268
      %p270 = scmp.lt.s32.totalorder %s23, 1
      %s271 = scalar_select %p270, %s23, 1
      %p272 = scmp.lt.s32.totalorder %s269, 1
      %s273 = scalar_select %p272, %s269, 1
      %s274 = smul.addr %s271, 2
      %s275 = sadd.s32 %s273, %s274
      %s276 = smul.addr %s275, 4
      %s277 = scalar_lea.vmem %s0, %s276
      %p278 = pneg %p65
      %p279 = pneg %p62
      %s280 = sadd.s32 %s22, %s24
      %p281 = scmp.lt.s32.totalorder %s280, 0
      %s282 = scalar_select %p281, %s280, 0
      %s283 = smul.u32 2, %s282
      %p284 = scmp.lt.s32.totalorder %s23, 1
      %s285 = scalar_select %p284, %s23, 1
      %p286 = scmp.lt.s32.totalorder %s283, 1
      %s287 = scalar_select %p286, %s283, 1
      %s288 = smul.addr %s285, 2
      %s289 = sadd.s32 %s287, %s288
      %s290 = scalar_lea.vmem %s1, %s289
      %p291 = pneg %p99
      %p292 = pneg %p96
      %p293 = pneg %p125
      %p294 = pneg %p122
      %p295 = scmp.lt.s32.totalorder %s22, 1
      %s296 = scalar_select %p295, %s22, 1
      %s297 = scalar_lea.vmem %s2, %s296
      %p298 = pneg %p151
      %p299 = pneg %p148
      %p300 = scmp.lt.s32.totalorder %s22, 1
      %s301 = scalar_select %p300, %s22, 1
      %s302 = smul.addr %s301, 4
      %s303 = scalar_lea.vmem %s3, %s302
      %p304 = pneg %p177
      %p305 = pneg %p174
      %p306 = scmp.lt.s32.totalorder %s22, 1
      %s307 = scalar_select %p306, %s22, 1
      %s308 = smul.addr %s307, 4
      %s309 = scalar_lea.vmem %s4, %s308
      %p310 = pneg %p203
      %p311 = pneg %p200
      %p312 = scmp.lt.s32.totalorder %s22, 1
      %s313 = scalar_select %p312, %s22, 1
      %s314 = smul.addr %s313, 4
      %s315 = scalar_lea.vmem %s5, %s314
      %s316 = sadd.s32 %s22, %s24
      %p317 = scmp.lt.s32.totalorder %s316, 0
      %s318 = scalar_select %p317, %s316, 0
      %s319 = smul.u32 2, %s318
      %p320 = scmp.lt.s32.totalorder %s23, 1
      %s321 = scalar_select %p320, %s23, 1
      %p322 = scmp.lt.s32.totalorder %s319, 1
      %s323 = scalar_select %p322, %s319, 1
      %s324 = smul.addr %s321, 2
      %s325 = sadd.s32 %s323, %s324
      %s326 = smul.addr %s325, 4
      %s327 = scalar_lea.vmem %s0, %s326
      %s328 = sadd.s32 %s22, %s24
      %p329 = scmp.lt.s32.totalorder %s328, 0
      %s330 = scalar_select %p329, %s328, 0
      %s331 = smul.u32 2, %s330
      %s332 = sadd.s32 %s22, %s24
      %p333 = scmp.lt.s32.totalorder %s332, 0
      %s334 = scalar_select %p333, %s332, 0
      %s335 = smul.u32 2, %s334
      %p336 = scmp.lt.s32.totalorder %s23, 1
      %s337 = scalar_select %p336, %s23, 1
      %p338 = scmp.lt.s32.totalorder %s335, 1
      %s339 = scalar_select %p338, %s335, 1
      %s340 = smul.addr %s337, 2
      %s341 = sadd.s32 %s339, %s340
      %s342 = scalar_lea.vmem %s1, %s341
      %s343 = sadd.s32 %s22, %s24
      %p344 = scmp.lt.s32.totalorder %s343, 0
      %s345 = scalar_select %p344, %s343, 0
      %s346 = smul.u32 2, %s345
      %p347 = scmp.lt.s32.totalorder %s22, 1
      %s348 = scalar_select %p347, %s22, 1
      %s349 = scalar_lea.vmem %s2, %s348
      %p350 = scmp.lt.s32.totalorder %s22, 1
      %s351 = scalar_select %p350, %s22, 1
      %s352 = smul.addr %s351, 4
      %s353 = scalar_lea.vmem %s3, %s352
      %p354 = scmp.lt.s32.totalorder %s22, 1
      %s355 = scalar_select %p354, %s22, 1
      %s356 = smul.addr %s355, 4
      %s357 = scalar_lea.vmem %s4, %s356
      %p358 = scmp.lt.s32.totalorder %s22, 1
      %s359 = scalar_select %p358, %s22, 1
      %s360 = smul.addr %s359, 4
      %s361 = scalar_lea.vmem %s5, %s360
      %p362 = scmp.eq.s32.totalorder %s23, 0
      %p363 = scmp.eq.s32.totalorder %s24, 0
      %p364 = pnand %p362, %p363
      %p365 = pneg %p364
      // Predicated region
      $region29: #{a_call__.1} parent=27 // pred_check
        _
      $region30: #{a_call__.1} parent=27 // pred_check_branch
        %367 = sbr.rel (%p364) target = $region32
      $region31: #{a_call__.1} parent=27 // pred_region
        %vm368 = vcmask 0
        %369 = vst.msk [vmem:[%s349] sm:$0x1] %vm368, 0.0
        %vm370 = vcmask 3072
        %371 = vst.msk [vmem:[%s353] sm:$0xf] %vm370, 0.0
        %372 = vst.msk [vmem:[%s357] sm:$0xf] %vm370, 0.0
        %373 = vst.msk [vmem:[%s361] sm:$0xf] %vm370, 0.0
      $region32: #{a_call__.1} parent=27 // pred_fallthru
        _
      %v374 = vld [vmem:[%s327] sm:$0xff]
      %v375 = vld [vmem:[%s342] sm:$0x3]
      %v376 = vlaneseq
      %v377 = vand.u32 %v376, 127
      %v378 = vadd.s32 %v377, 128
      %s379 = sadd.s32 %s22, %s24
      %s380 = smul.u32 %s379, 256
      %v381 = vstv %s380
      %v382 = vadd.s32 %v381, %v377
      %v383 = vadd.s32 %v381, %v378
      %vm384 = vcmp.lt.s32.totalorder %v382, 256
      %vm385 = vcmp.lt.s32.totalorder %v383, 256
      %v386 = vsel %vm384, 1, 0
      %v387 = vsel %vm385, 1, 0
      %v388 = vcvt.s32.f32 %v386
      %v389 = vcvt.s32.f32 %v387
      %v390 = vlaneseq
      %v391 = vshrl.u32 %v390, 7
      %v392 = vlaneseq
      %v393 = vshrl.u32 %v392, 7
      %v394 = vsub.s32 0, %v393
      %v395 = vrot.slane %v375, %v394
      %v396 = vlaneseq
      %v397 = vshrl.u32 %v396, 7
      %v398 = vsub.s32 1, %v397
      %v399 = vrot.slane %v375, %v398
      %vm400 = vcmp.eq.s32.totalorder %v391, %v395
      %vm401 = vcmp.eq.s32.totalorder %v391, %v399
      %v402 = vsel %vm400, 1, 0
      %v403 = vsel %vm401, 1, 0
      %v404 = vcvt.s32.f32 %v402
      %v405 = vcvt.s32.f32 %v403
      %v407 = vcombine.high %v374, %v374
      %vm409 = vcmask 1043456
      %v410 = vsel %vm409, %v374, -inf
      %v411 = vrot.slane %v410, 4
      %v412 = vmax.f32 %v410, %v411
      %v413 = vrot.slane %v412, 2
      %v414 = vmax.f32 %v412, %v413
      %v415 = vrot.slane %v414, 1
      %v416 = vmax.f32 %v414, %v415
      %v417 = vsel %vm409, %v407, -inf
      %v418 = vrot.slane %v417, 4
      %v419 = vmax.f32 %v417, %v418
      %v420 = vrot.slane %v419, 2
      %v421 = vmax.f32 %v419, %v420
      %v422 = vrot.slane %v421, 1
      %v423 = vmax.f32 %v421, %v422
      %v426 = vcombine.low %v416, %v423
      %v428 = vsub.f32 %v374, %v426
      %vm429 = vcmp.eq.s32.totalorder %v386, 1
      %vm430 = vcmp.eq.s32.totalorder %v387, 1
      %v432 = vcombine.high %v428, %v428
      %v434 = vsel %vm429, %v428, 0.0
      %v435 = vsel %vm430, %v432, 0.0
      %v436 = vmul.f32 %v434, 1.442695
      %v437 = vpow.pop %v436
      %v438 = vmul.f32 %v435, 1.442695
      %v439 = vpow.pop %v438
      %v440 = vsel %vm409, %v437, 0.0
      %v441 = vrot.slane %v440, 4
      %v442 = vadd.f32 %v440, %v441
      %v443 = vrot.slane %v442, 2
      %v444 = vadd.f32 %v442, %v443
      %v445 = vrot.slane %v444, 1
      %v446 = vadd.f32 %v444, %v445
      %v447 = vsel %vm409, %v439, 0.0
      %v448 = vrot.slane %v447, 4
      %v449 = vadd.f32 %v447, %v448
      %v450 = vrot.slane %v449, 2
      %v451 = vadd.f32 %v449, %v450
      %v452 = vrot.slane %v451, 1
      %v453 = vadd.f32 %v451, %v452
      %v454 = vrcp.pop %v446
      %v455 = vrcp.pop %v453
      %v456 = vmul.f32 %v446, %v454
      %v457 = vmul.f32 %v453, %v455
      %v458 = vsub.f32 2.0, %v456
      %v459 = vsub.f32 2.0, %v457
      %v460 = vmul.f32 %v454, %v458
      %v461 = vmul.f32 %v455, %v459
      %v462 = vmul.f32 %v437, %v460
      %v463 = vmul.f32 %v439, %v461
      %v464 = vmul.f32 %v404, %v434
      %v465 = vmul.f32 %v405, %v435
      %v466 = vsel %vm409, %v464, 0.0
      %v467 = vrot.slane %v466, 4
      %v468 = vadd.f32 %v466, %v467
      %v469 = vrot.slane %v468, 2
      %v470 = vadd.f32 %v468, %v469
      %v471 = vrot.slane %v470, 1
      %v472 = vadd.f32 %v470, %v471
      %v473 = vsel %vm409, %v465, 0.0
      %v474 = vrot.slane %v473, 4
      %v475 = vadd.f32 %v473, %v474
      %v476 = vrot.slane %v475, 2
      %v477 = vadd.f32 %v475, %v476
      %v478 = vrot.slane %v477, 1
      %v479 = vadd.f32 %v477, %v478
      %v480 = vld [vmem:[%s349] sm:$0x1]
      %v481 = vlog2.pop %v446
      %v482 = vmul.f32 %v481, 0.6931472
      %v483 = vlog2.pop %v453
      %v484 = vmul.f32 %v483, 0.6931472
      %v485 = vsub.f32 %v482, %v472
      %v486 = vsub.f32 %v484, %v479
      %v487 = vmul.f32 %v485, %v388
      %v488 = vmul.f32 %v486, %v389
      %v489 = vadd.f32 %v487, %v488
      %490 = vadd.xlane.f32.xlu0 %v489
      %v491 = vpop.xlane.xlu0 %490
      %v492 = vadd.f32 %v480, %v491
      %vm493 = vcmask 0
      %494 = vst.msk [vmem:[%s349] sm:$0x1] %vm493, %v492
      %v495 = vmul.f32 %v404, %v388
      %v496 = vmul.f32 %v405, %v389
      %v497 = vld [vmem:[%s353] sm:$0xf]
      %v498 = vmul.f32 %v462, %v495
      %v499 = vmul.f32 %v463, %v496
      %v500 = vsel %vm409, %v498, 0.0
      %v501 = vsel %vm409, %v499, 0.0
      %v502 = vadd.f32 %v500, %v501
      %503 = vadd.xlane.f32.xlu0 %v502
      %v504 = vpop.xlane.xlu0 %503
      %v505 = vadd.f32 %v497, %v504
      %vm506 = vcmask 3072
      %507 = vst.msk [vmem:[%s353] sm:$0xf] %vm506, %v505
      %v508 = vld [vmem:[%s357] sm:$0xf]
      %v509 = vmul.f32 %v462, %v388
      %v510 = vmul.f32 %v463, %v389
      %v511 = vsel %vm409, %v509, 0.0
      %v512 = vsel %vm409, %v510, 0.0
      %v513 = vadd.f32 %v511, %v512
      %514 = vadd.xlane.f32.xlu0 %v513
      %v515 = vpop.xlane.xlu0 %514
      %v516 = vadd.f32 %v508, %v515
      %517 = vst.msk [vmem:[%s357] sm:$0xf] %vm506, %v516
      %v518 = vld [vmem:[%s361] sm:$0xf]
      %v519 = vsel %vm409, %v495, 0.0
      %v520 = vsel %vm409, %v496, 0.0
      %v521 = vadd.f32 %v519, %v520
      %522 = vadd.xlane.f32.xlu0 %v521
      %v523 = vpop.xlane.xlu0 %522
      %v524 = vadd.f32 %v518, %v523
      %525 = vst.msk [vmem:[%s361] sm:$0xf] %vm506, %v524
      %p526 = scmp.lt.s32.totalorder %s22, 1
      %s527 = scalar_select %p526, %s22, 1
      %s528 = scalar_lea.vmem %s2, %s527
      %p529 = scmp.lt.s32.totalorder %s22, 1
      %s530 = scalar_select %p529, %s22, 1
      %s531 = smul.addr %s530, 4
      %s532 = scalar_lea.vmem %s3, %s531
      %p533 = scmp.lt.s32.totalorder %s22, 1
      %s534 = scalar_select %p533, %s22, 1
      %s535 = smul.addr %s534, 4
      %s536 = scalar_lea.vmem %s4, %s535
      %p537 = scmp.lt.s32.totalorder %s22, 1
      %s538 = scalar_select %p537, %s22, 1
      %s539 = smul.addr %s538, 4
      %s540 = scalar_lea.vmem %s5, %s539
      // Predicated region
      $region33: #{a_call__.1} parent=27 // pred_check
        %p541 = pneg %p122
      $region34: #{a_call__.1} parent=27 // pred_check_branch
        %543 = sbr.rel (%p541) target = $region36
      $region35: #{a_call__.1} parent=27 // pred_region
        _
      $region36: #{a_call__.1} parent=27 // pred_fallthru
        _
      // Predicated region
      $region37: #{a_call__.1} parent=27 // pred_check
        %p544 = pneg %p148
      $region38: #{a_call__.1} parent=27 // pred_check_branch
        %546 = sbr.rel (%p544) target = $region40
      $region39: #{a_call__.1} parent=27 // pred_region
        _
      $region40: #{a_call__.1} parent=27 // pred_fallthru
        _
      // Predicated region
      $region41: #{a_call__.1} parent=27 // pred_check
        %p547 = pneg %p174
      $region42: #{a_call__.1} parent=27 // pred_check_branch
        %549 = sbr.rel (%p547) target = $region44
      $region43: #{a_call__.1} parent=27 // pred_region
        _
      $region44: #{a_call__.1} parent=27 // pred_fallthru
        _
      // Predicated region
      $region45: #{a_call__.1} parent=27 // pred_check
        %p550 = pneg %p200
      $region46: #{a_call__.1} parent=27 // pred_check_branch
        %552 = sbr.rel (%p550) target = $region48
      $region47: #{a_call__.1} parent=27 // pred_region
        _
      $region48: #{a_call__.1} parent=27 // pred_fallthru
        _
    $region28: #{a_call__.1} parent=5 // pred_fallthru
      _
    %p553 = scmp.le.s32.totalorder 2, %s12
    // Predicated region
    $region49: #{a_call__.1} parent=5 // pred_check
      %p554 = pneg %p553
    $region50: #{a_call__.1} parent=5 // pred_check_branch
      %556 = sbr.rel (%p554) target = $region52
    $region51: #{a_call__.1} parent=5 // pred_region
      %s557 = ssub.s32 %s12, 2
      // Predicated region
      $region53: #{a_call__.1} parent=51 // pred_check
        %p558 = pneg %p128
      $region54: #{a_call__.1} parent=51 // pred_check_branch
        %560 = sbr.rel (%p558) target = $region56
      $region55: #{a_call__.1} parent=51 // pred_region
        %p561 = scmp.lt.s32.totalorder %s25, 1
        %s562 = scalar_select %p561, %s25, 1
        %s563 = scalar_lea.vmem %s2, %s562
      $region56: #{a_call__.1} parent=51 // pred_fallthru
        _
      // Predicated region
      $region57: #{a_call__.1} parent=51 // pred_check
        %p564 = pneg %p154
      $region58: #{a_call__.1} parent=51 // pred_check_branch
        %566 = sbr.rel (%p564) target = $region60
      $region59: #{a_call__.1} parent=51 // pred_region
        %p567 = scmp.lt.s32.totalorder %s25, 1
        %s568 = scalar_select %p567, %s25, 1
        %s569 = smul.addr %s568, 4
        %s570 = scalar_lea.vmem %s3, %s569
      $region60: #{a_call__.1} parent=51 // pred_fallthru
        _
      // Predicated region
      $region61: #{a_call__.1} parent=51 // pred_check
        %p571 = pneg %p180
      $region62: #{a_call__.1} parent=51 // pred_check_branch
        %573 = sbr.rel (%p571) target = $region64
      $region63: #{a_call__.1} parent=51 // pred_region
        %p574 = scmp.lt.s32.totalorder %s25, 1
        %s575 = scalar_select %p574, %s25, 1
        %s576 = smul.addr %s575, 4
        %s577 = scalar_lea.vmem %s4, %s576
      $region64: #{a_call__.1} parent=51 // pred_fallthru
        _
      // Predicated region
      $region65: #{a_call__.1} parent=51 // pred_check
        %p578 = pneg %p206
      $region66: #{a_call__.1} parent=51 // pred_check_branch
        %580 = sbr.rel (%p578) target = $region68
      $region67: #{a_call__.1} parent=51 // pred_region
        %p581 = scmp.lt.s32.totalorder %s25, 1
        %s582 = scalar_select %p581, %s25, 1
        %s583 = smul.addr %s582, 4
        %s584 = scalar_lea.vmem %s5, %s583
      $region68: #{a_call__.1} parent=51 // pred_fallthru
        _
    $region52: #{a_call__.1} parent=5 // pred_fallthru
      _
  $region6: #{a_call__.1} parent=0 // loop_footer
    %s16 = sadd.s32 1, %s12
  $region7: #{a_call__.1} parent=0 // loop_footer_branch
    %11 = sbr.rel target = $region3
  $region8: #{a_call__.1} parent=0 // loop_exit
    _

</llo_original>
